<compile_context>
chip_gen: v6e
topology: v6e:2x2x1
jax: 0.10.0
libtpu: 0.0.40
codegen_flags: <defaults>
</compile_context>

<pallas_src>
import functools

import jax
import jax.numpy as jnp
from jax.experimental import pallas as pl
from jax.experimental.pallas import tpu as pltpu


def _round_up(x: int, m: int) -> int:
    return ((x + m - 1) // m) * m


def rnn_step_kernel(x_ref, h_ref, u_ref, w_ref, b_ref, v_ref, c_ref,
                    f_ref, h_new_ref, *, batch):
    # Two MXU contractions accumulated in f32 (no HBM concat of operands).
    s = jnp.dot(x_ref[...], u_ref[...], preferred_element_type=jnp.float32)
    s = s + jnp.dot(h_ref[...], w_ref[...], preferred_element_type=jnp.float32)
    s = s + b_ref[...]

    # New hidden state (padded rows/cols are sliced off by the wrapper).
    h_new_ref[...] = jnp.tanh(s)

    # Output projection: o = s @ V + c
    o = jnp.dot(s, v_ref[...], preferred_element_type=jnp.float32) + c_ref[...]

    # Softmax over the BATCH axis (dim=0), matching F.softmax(o, dim=0).
    # Padded batch rows are forced to -inf BEFORE the exp -> they contribute
    # exactly 0 to the sum and cannot overflow.
    row_ids = jax.lax.broadcasted_iota(jnp.int32, o.shape, 0)
    o_masked = jnp.where(row_ids < batch, o, -jnp.inf)
    o_max = jnp.max(o_masked, axis=0, keepdims=True)
    e = jnp.exp(o_masked - o_max)                    # exp(-inf) == 0 for padding
    denom = jnp.sum(e, axis=0, keepdims=True)
    # Exact division: the approx EUP reciprocal caused the accuracy miss.
    f_ref[...] = e / denom


def pad_weights(u, w, b, v, c):
    """Pad the constant weights to (8,128)-friendly shapes ONCE at init time.

    Re-padding weights every step is pure wasted HBM traffic; cache these.
    """
    n_inputs, n_neurons = u.shape
    n_outputs = v.shape[1]
    i_pad = _round_up(n_inputs, 128)
    n_pad = _round_up(n_neurons, 128)
    o_pad = _round_up(n_outputs, 128)
    f32 = jnp.float32
    u_p = jnp.pad(u.astype(f32), ((0, i_pad - n_inputs), (0, n_pad - n_neurons)))
    w_p = jnp.pad(w.astype(f32), ((0, n_pad - n_neurons), (0, n_pad - n_neurons)))
    b_p = jnp.pad(b.astype(f32), ((0, 0), (0, n_pad - n_neurons)))
    v_p = jnp.pad(v.astype(f32), ((0, n_pad - n_neurons), (0, o_pad - n_outputs)))
    c_p = jnp.pad(c.astype(f32), ((0, 0), (0, o_pad - n_outputs)))
    return u_p, w_p, b_p, v_p, c_p


@functools.partial(jax.jit, static_argnames=("n_inputs", "n_neurons", "n_outputs"))
def simple_rnn_step(x, h, u_p, w_p, b_p, v_p, c_p, *,
                    n_inputs, n_neurons, n_outputs):
    batch = x.shape[0]
    b_pad = _round_up(batch, 8)
    i_pad = u_p.shape[0]
    n_pad = w_p.shape[0]
    o_pad = v_p.shape[1]
    f32 = jnp.float32

    # Per-step activation padding only (weights are already padded).
    x_p = jnp.pad(x.astype(f32), ((0, b_pad - batch), (0, i_pad - n_inputs)))
    h_p = jnp.pad(h.astype(f32), ((0, b_pad - batch), (0, n_pad - n_neurons)))

    vmem = pl.BlockSpec(memory_space=pltpu.MemorySpace.VMEM)
    kernel = functools.partial(rnn_step_kernel, batch=batch)

    flops = (2 * b_pad * i_pad * n_pad
             + 2 * b_pad * n_pad * n_pad
             + 2 * b_pad * n_pad * o_pad)
    transcendentals = b_pad * n_pad + b_pad * o_pad          # tanh + exp
    bytes_accessed = 4 * (b_pad * i_pad + b_pad * n_pad      # x, h
                          + i_pad * n_pad + n_pad * n_pad    # U, W
                          + n_pad + n_pad * o_pad + o_pad    # b, V, c
                          + b_pad * o_pad + b_pad * n_pad)   # f, h_new

    f_pad, h_new_pad = pl.pallas_call(
        kernel,
        out_shape=(
            jax.ShapeDtypeStruct((b_pad, o_pad), f32),
            jax.ShapeDtypeStruct((b_pad, n_pad), f32),
        ),
        in_specs=[vmem] * 7,
        out_specs=(vmem, vmem),
        cost_estimate=pl.CostEstimate(flops=flops,
                                      transcendentals=transcendentals,
                                      bytes_accessed=bytes_accessed),
    )(x_p, h_p, u_p, w_p, b_p, v_p, c_p)

    # Slice back to logical shapes.
    return f_pad[:batch, :n_outputs], h_new_pad[:batch, :n_neurons]


if __name__ == "__main__":
    batch_size = 4
    n_inputs = 3
    n_neurons = 5
    n_outputs = 2

    key = jax.random.PRNGKey(0)
    k_x, k_u, k_w, k_v, k_h = jax.random.split(key, 5)

    # deterministic "torch.randn"-style parameter init
    X = jax.random.normal(k_x, (batch_size, n_inputs), dtype=jnp.float32)
    U = jax.random.normal(k_u, (n_inputs, n_neurons), dtype=jnp.float32)
    W = jax.random.normal(k_w, (n_neurons, n_neurons), dtype=jnp.float32)
    V = jax.random.normal(k_v, (n_neurons, n_outputs), dtype=jnp.float32)
    h = jax.random.normal(k_h, (batch_size, n_neurons), dtype=jnp.float32)
    b = jnp.zeros((1, n_neurons), dtype=jnp.float32)
    c = jnp.zeros((1, n_outputs), dtype=jnp.float32)

    # Pad weights once (init time) and reuse on every step.
    U_p, W_p, b_p, V_p, c_p = pad_weights(U, W, b, V, c)

    f_out, h_new = simple_rnn_step(X, h, U_p, W_p, b_p, V_p, c_p,
                                   n_inputs=n_inputs,
                                   n_neurons=n_neurons,
                                   n_outputs=n_outputs)
    jax.block_until_ready((f_out, h_new))

    # pure-JAX reference check
    s_ref = X @ U + h @ W + b
    h_ref = jnp.tanh(s_ref)
    o_ref = s_ref @ V + c
    f_ref = jax.nn.softmax(o_ref, axis=0)

    assert f_out.shape == (batch_size, n_outputs)
    assert h_new.shape == (batch_size, n_neurons)
    assert jnp.allclose(f_out, f_ref, atol=1e-4), "softmax output mismatch"
    assert jnp.allclose(h_new, h_ref, atol=1e-4), "hidden state mismatch"

    print("KERNEL_OK")
</pallas_src>

<mosaic_0001>
module attributes {stable_mosaic.version = 11 : i64} {
  func.func @rnn_step_kernel(%arg0: memref<8x128xf32, #tpu.memory_space<vmem>>, %arg1: memref<8x128xf32, #tpu.memory_space<vmem>>, %arg2: memref<128x128xf32, #tpu.memory_space<vmem>>, %arg3: memref<128x128xf32, #tpu.memory_space<vmem>>, %arg4: memref<1x128xf32, #tpu.memory_space<vmem>>, %arg5: memref<128x128xf32, #tpu.memory_space<vmem>>, %arg6: memref<1x128xf32, #tpu.memory_space<vmem>>, %arg7: memref<8x128xf32, #tpu.memory_space<vmem>>, %arg8: memref<8x128xf32, #tpu.memory_space<vmem>>) attributes {dimension_semantics = [], scalar_prefetch = 0 : i64, scratch_operands = 0 : i64, tpu.core_type = #tpu.core_type<tc>} {
    %c0 = arith.constant 0 : index
    %c0_0 = arith.constant 0 : index
    %0 = vector.load %arg0[%c0, %c0_0] : memref<8x128xf32, #tpu.memory_space<vmem>>, vector<8x128xf32>
    %c0_1 = arith.constant 0 : index
    %c0_2 = arith.constant 0 : index
    %1 = vector.load %arg2[%c0_1, %c0_2] : memref<128x128xf32, #tpu.memory_space<vmem>>, vector<128x128xf32>
    %cst = arith.constant dense<0.000000e+00> : vector<8x128xf32>
    %2 = tpu.matmul %0, %1, %cst {dimension_numbers = #tpu.dot_dimension_numbers<[1], [0], [0], [1], [0, 0, 1, 1], [], []>} : vector<8x128xf32>, vector<128x128xf32>, vector<8x128xf32> -> vector<8x128xf32>
    %c0_3 = arith.constant 0 : index
    %c0_4 = arith.constant 0 : index
    %3 = vector.load %arg1[%c0_3, %c0_4] : memref<8x128xf32, #tpu.memory_space<vmem>>, vector<8x128xf32>
    %c0_5 = arith.constant 0 : index
    %c0_6 = arith.constant 0 : index
    %4 = vector.load %arg3[%c0_5, %c0_6] : memref<128x128xf32, #tpu.memory_space<vmem>>, vector<128x128xf32>
    %cst_7 = arith.constant dense<0.000000e+00> : vector<8x128xf32>
    %5 = tpu.matmul %3, %4, %cst_7 {dimension_numbers = #tpu.dot_dimension_numbers<[1], [0], [0], [1], [0, 0, 1, 1], [], []>} : vector<8x128xf32>, vector<128x128xf32>, vector<8x128xf32> -> vector<8x128xf32>
    %6 = arith.addf %2, %5 : vector<8x128xf32>
    %c0_8 = arith.constant 0 : index
    %c0_9 = arith.constant 0 : index
    %7 = vector.load %arg4[%c0_8, %c0_9] : memref<1x128xf32, #tpu.memory_space<vmem>>, vector<1x128xf32>
    %8 = vector.broadcast %7 : vector<1x128xf32> to vector<8x128xf32>
    %9 = arith.addf %6, %8 : vector<8x128xf32>
    %10 = math.tanh %9 : vector<8x128xf32>
    %c0_10 = arith.constant 0 : index
    %c0_11 = arith.constant 0 : index
    %11 = vector.load %arg8[%c0_10, %c0_11] : memref<8x128xf32, #tpu.memory_space<vmem>>, vector<8x128xf32>
    tpu.vector_store %arg8[%c0_10, %c0_11], %10 {strides = array<i32>} : memref<8x128xf32, #tpu.memory_space<vmem>>, vector<8x128xf32>,
    %c0_12 = arith.constant 0 : index
    %c0_13 = arith.constant 0 : index
    %12 = vector.load %arg5[%c0_12, %c0_13] : memref<128x128xf32, #tpu.memory_space<vmem>>, vector<128x128xf32>
    %cst_14 = arith.constant dense<0.000000e+00> : vector<8x128xf32>
    %13 = tpu.matmul %9, %12, %cst_14 {dimension_numbers = #tpu.dot_dimension_numbers<[1], [0], [0], [1], [0, 0, 1, 1], [], []>} : vector<8x128xf32>, vector<128x128xf32>, vector<8x128xf32> -> vector<8x128xf32>
    %c0_15 = arith.constant 0 : index
    %c0_16 = arith.constant 0 : index
    %14 = vector.load %arg6[%c0_15, %c0_16] : memref<1x128xf32, #tpu.memory_space<vmem>>, vector<1x128xf32>
    %15 = vector.broadcast %14 : vector<1x128xf32> to vector<8x128xf32>
    %16 = arith.addf %13, %15 : vector<8x128xf32>
    %17 = tpu.iota {dimensions = array<i32: 0>} : vector<8x128xi32>
    %c4_i32 = arith.constant 4 : i32
    %18 = vector.broadcast %c4_i32 : i32 to vector<8x128xi32>
    %19 = arith.cmpi slt, %17, %18 : vector<8x128xi32>
    %cst_17 = arith.constant 0xFF800000 : f32
    %20 = vector.broadcast %cst_17 : f32 to vector<8x128xf32>
    %21 = arith.select %19, %16, %20 : vector<8x128xi1>, vector<8x128xf32>
    %cst_18 = arith.constant dense<0xFF800000> : vector<128xf32>
    %22 = vector.multi_reduction <maximumf>, %21, %cst_18 [0] : vector<8x128xf32> to vector<128xf32>
    %23 = vector.shape_cast %22 : vector<128xf32> to vector<1x128xf32>
    %24 = vector.broadcast %23 : vector<1x128xf32> to vector<8x128xf32>
    %25 = arith.subf %21, %24 : vector<8x128xf32>
    %26 = math.exp %25 : vector<8x128xf32>
    %cst_19 = arith.constant dense<0.000000e+00> : vector<128xf32>
    %27 = vector.multi_reduction <add>, %26, %cst_19 [0] : vector<8x128xf32> to vector<128xf32>
    %28 = vector.shape_cast %27 : vector<128xf32> to vector<1x128xf32>
    %29 = vector.broadcast %28 : vector<1x128xf32> to vector<8x128xf32>
    %30 = arith.divf %26, %29 : vector<8x128xf32>
    %c0_20 = arith.constant 0 : index
    %c0_21 = arith.constant 0 : index
    %31 = vector.load %arg7[%c0_20, %c0_21] : memref<8x128xf32, #tpu.memory_space<vmem>>, vector<8x128xf32>
    tpu.vector_store %arg7[%c0_20, %c0_21], %30 {strides = array<i32>} : memref<8x128xf32, #tpu.memory_space<vmem>>, vector<8x128xf32>,
    return
  }
}

</mosaic_0001>

<llo_original>
// kernel: simple_rnn_step.1
$region0: #{simple_rnn_step.1}
  #allocation0 [shape = 'u32[]', space=smem, size = 0x4, offset = 0x4, fixed_abs, tag = 'smem constant byte address 0x4 - core index']
  #allocation1 [shape = 'u32[144,128]{1,0:T(1,128)}', space=vmem, size = 0x12000, scoped, tag = 'internal scratch']
  %s0 = inlined_call_operand.vmem [shape: f32[8,128], index: 0, kind: input, shape index: {}]
  %s1 = inlined_call_operand.vmem [shape: f32[8,128], index: 1, kind: input, shape index: {}]
  %s2 = inlined_call_operand.hbm [shape: f32[128,128], index: 2, kind: input, shape index: {}]
  %s3 = inlined_call_operand.hbm [shape: f32[128,128], index: 3, kind: input, shape index: {}]
  %s4 = inlined_call_operand.vmem [shape: f32[1,128], index: 4, kind: input, shape index: {}]
  %s5 = inlined_call_operand.hbm [shape: f32[128,128], index: 5, kind: input, shape index: {}]
  %s6 = inlined_call_operand.vmem [shape: f32[1,128], index: 6, kind: input, shape index: {}]
  %s7 = inlined_call_operand.vmem [shape: f32[8,128], index: 7, kind: output, shape index: {0}]
  %s8 = inlined_call_operand.vmem [shape: f32[8,128], index: 8, kind: output, shape index: {1}]
  %9 = xla_tuple %s7, %s8
  %s10 = sld [smem:[#allocation0]]
  $region58: #{simple_rnn_step.1} parent=0
    _
  %s12 = ssub.s32 1, %s10
  %s13 = scalar_select 0, %s12, %s10
  $region1: #{simple_rnn_step.1} parent=0
    #allocation2 [shape = 'u8[65536]{0}', space=vmem, size = 0x10000, scoped, tag = 'input window, operand 2, single buffered']
    #allocation3 [shape = 's32[1]{0}', space=sflag, size = 0x4, scoped, tag = 'scoped memory for simple_rnn_step.1']
    #allocation4 [shape = 'u8[65536]{0}', space=vmem, size = 0x10000, scoped, tag = 'input window, operand 3, single buffered']
    #allocation5 [shape = 's32[1]{0}', space=sflag, size = 0x4, scoped, tag = 'scoped memory for simple_rnn_step.1']
    #allocation6 [shape = 'u8[65536]{0}', space=vmem, size = 0x10000, scoped, tag = 'input window, operand 5, single buffered']
    %14 = vsyncpa [#allocation3], 0
    %15 = vsyncpa [#allocation5], 0
    // Predicated region
    $region2: #{simple_rnn_step.1} parent=1 // pred_check
      _
    $region3: #{simple_rnn_step.1} parent=1 // pred_check_branch
      %17 = sbr.rel (0) target = $region5
    $region4: #{simple_rnn_step.1} parent=1 // pred_region
      _
    $region5: #{simple_rnn_step.1} parent=1 // pred_fallthru
      _
    // Predicated region
    $region6: #{simple_rnn_step.1} parent=1 // pred_check
      _
    $region7: #{simple_rnn_step.1} parent=1 // pred_check_branch
      %19 = sbr.rel (0) target = $region9
    $region8: #{simple_rnn_step.1} parent=1 // pred_region
      _
    $region9: #{simple_rnn_step.1} parent=1 // pred_fallthru
      _
    // Predicated region
    $region10: #{simple_rnn_step.1} parent=1 // pred_check
      _
    $region11: #{simple_rnn_step.1} parent=1 // pred_check_branch
      %21 = sbr.rel (0) target = $region13
    $region12: #{simple_rnn_step.1} parent=1 // pred_region
      %s23 = ssub.s32 2048, 2048
      %24 = vsyncadd [#allocation3], %s23
      %s25 = sshll.u32 [#allocation2], 4
      %s26 = int_to_ptr.vmem [resolvable:$true] %s25
      %31 = dma.hbm_to_vmem [thread:$0]  %s2, 2048, %s26, [#allocation3], 128, 128, 8
    $region13: #{simple_rnn_step.1} parent=1 // pred_fallthru
      _
    // Predicated region
    $region14: #{simple_rnn_step.1} parent=1 // pred_check
      _
    $region15: #{simple_rnn_step.1} parent=1 // pred_check_branch
      %33 = sbr.rel (0) target = $region17
    $region16: #{simple_rnn_step.1} parent=1 // pred_region
      %s35 = ssub.s32 2048, 2048
      %36 = vsyncadd [#allocation5], %s35
      %s37 = sshll.u32 [#allocation4], 4
      %s38 = int_to_ptr.vmem [resolvable:$true] %s37
      %43 = dma.hbm_to_vmem [thread:$0]  %s3, 2048, %s38, [#allocation5], 128, 128, 8
    $region17: #{simple_rnn_step.1} parent=1 // pred_fallthru
      _
    // Predicated region
    $region18: #{simple_rnn_step.1} parent=1 // pred_check
      _
    $region19: #{simple_rnn_step.1} parent=1 // pred_check_branch
      %45 = sbr.rel (0) target = $region21
    $region20: #{simple_rnn_step.1} parent=1 // pred_region
      _
    $region21: #{simple_rnn_step.1} parent=1 // pred_fallthru
      _
    // Predicated region
    $region22: #{simple_rnn_step.1} parent=1 // pred_check
      _
    $region23: #{simple_rnn_step.1} parent=1 // pred_check_branch
      %47 = sbr.rel (0) target = $region25
    $region24: #{simple_rnn_step.1} parent=1 // pred_region
      %s49 = ssub.s32 2048, 2048
      %50 = vsyncadd [#allocation5], %s49
      %s51 = sshll.u32 [#allocation6], 4
      %s52 = int_to_ptr.vmem [resolvable:$true] %s51
      %57 = dma.hbm_to_vmem [thread:$0]  %s5, 2048, %s52, [#allocation5], 128, 128, 8
    $region25: #{simple_rnn_step.1} parent=1 // pred_fallthru
      _
    // Predicated region
    $region26: #{simple_rnn_step.1} parent=1 // pred_check
      _
    $region27: #{simple_rnn_step.1} parent=1 // pred_check_branch
      %59 = sbr.rel (0) target = $region29
    $region28: #{simple_rnn_step.1} parent=1 // pred_region
      _
    $region29: #{simple_rnn_step.1} parent=1 // pred_fallthru
      _
    // Predicated region
    $region30: #{simple_rnn_step.1} parent=1 // pred_check
      _
    $region31: #{simple_rnn_step.1} parent=1 // pred_check_branch
      %61 = sbr.rel (0) target = $region33
    $region32: #{simple_rnn_step.1} parent=1 // pred_region
      %62 = dma.done [#allocation3], 2048
    $region33: #{simple_rnn_step.1} parent=1 // pred_fallthru
      _
    // Predicated region
    $region34: #{simple_rnn_step.1} parent=1 // pred_check
      _
    $region35: #{simple_rnn_step.1} parent=1 // pred_check_branch
      %64 = sbr.rel (0) target = $region37
    $region36: #{simple_rnn_step.1} parent=1 // pred_region
      %65 = dma.done [#allocation5], 2048
    $region37: #{simple_rnn_step.1} parent=1 // pred_fallthru
      _
    // Predicated region
    $region38: #{simple_rnn_step.1} parent=1 // pred_check
      _
    $region39: #{simple_rnn_step.1} parent=1 // pred_check_branch
      %67 = sbr.rel (0) target = $region41
    $region40: #{simple_rnn_step.1} parent=1 // pred_region
      %68 = dma.done [#allocation5], 2048
    $region41: #{simple_rnn_step.1} parent=1 // pred_fallthru
      _
    %v69 = vld [vmem:[%s0] sm:$0xff]
    %v70 = vld [vmem:[#allocation2] sm:$0xff]
    %v71 = vld [vmem:[#allocation2 + $0x8] sm:$0xff]
    %v72 = vld [vmem:[#allocation2 + $0x10] sm:$0xff]
    %v73 = vld [vmem:[#allocation2 + $0x18] sm:$0xff]
    %v74 = vld [vmem:[#allocation2 + $0x20] sm:$0xff]
    %v75 = vld [vmem:[#allocation2 + $0x28] sm:$0xff]
    %v76 = vld [vmem:[#allocation2 + $0x30] sm:$0xff]
    %v77 = vld [vmem:[#allocation2 + $0x38] sm:$0xff]
    %v78 = vld [vmem:[#allocation2 + $0x40] sm:$0xff]
    %v79 = vld [vmem:[#allocation2 + $0x48] sm:$0xff]
    %v80 = vld [vmem:[#allocation2 + $0x50] sm:$0xff]
    %v81 = vld [vmem:[#allocation2 + $0x58] sm:$0xff]
    %v82 = vld [vmem:[#allocation2 + $0x60] sm:$0xff]
    %v83 = vld [vmem:[#allocation2 + $0x68] sm:$0xff]
    %v84 = vld [vmem:[#allocation2 + $0x70] sm:$0xff]
    %v85 = vld [vmem:[#allocation2 + $0x78] sm:$0xff]
    %v86 = vld [vmem:[%s1] sm:$0xff]
    %v87 = vld [vmem:[#allocation4] sm:$0xff]
    %v88 = vld [vmem:[#allocation4 + $0x8] sm:$0xff]
    %v89 = vld [vmem:[#allocation4 + $0x10] sm:$0xff]
    %v90 = vld [vmem:[#allocation4 + $0x18] sm:$0xff]
    %v91 = vld [vmem:[#allocation4 + $0x20] sm:$0xff]
    %v92 = vld [vmem:[#allocation4 + $0x28] sm:$0xff]
    %v93 = vld [vmem:[#allocation4 + $0x30] sm:$0xff]
    %v94 = vld [vmem:[#allocation4 + $0x38] sm:$0xff]
    %v95 = vld [vmem:[#allocation4 + $0x40] sm:$0xff]
    %v96 = vld [vmem:[#allocation4 + $0x48] sm:$0xff]
    %v97 = vld [vmem:[#allocation4 + $0x50] sm:$0xff]
    %v98 = vld [vmem:[#allocation4 + $0x58] sm:$0xff]
    %v99 = vld [vmem:[#allocation4 + $0x60] sm:$0xff]
    %v100 = vld [vmem:[#allocation4 + $0x68] sm:$0xff]
    %v101 = vld [vmem:[#allocation4 + $0x70] sm:$0xff]
    %v102 = vld [vmem:[#allocation4 + $0x78] sm:$0xff]
    %103 = vmatprep.subr.mxu0 0.0
    %104 = vmatpush1.msra.mxu0 %v102
    %105 = vmatprep.subr.mxu0 0.0
    %106 = vmatpush1.msra.mxu0 %v101
    %107 = vmatprep.subr.mxu0 0.0
    %108 = vmatpush1.msra.mxu0 %v100
    %109 = vmatprep.subr.mxu0 0.0
    %110 = vmatpush1.msra.mxu0 %v99
    %111 = vmatprep.subr.mxu0 0.0
    %112 = vmatpush1.msra.mxu0 %v98
    %113 = vmatprep.subr.mxu0 0.0
    %114 = vmatpush1.msra.mxu0 %v97
    %115 = vmatprep.subr.mxu0 0.0
    %116 = vmatpush1.msra.mxu0 %v96
    %117 = vmatprep.subr.mxu0 0.0
    %118 = vmatpush1.msra.mxu0 %v95
    %119 = vmatprep.subr.mxu0 0.0
    %120 = vmatpush1.msra.mxu0 %v94
    %121 = vmatprep.subr.mxu0 0.0
    %122 = vmatpush1.msra.mxu0 %v93
    %123 = vmatprep.subr.mxu0 0.0
    %124 = vmatpush1.msra.mxu0 %v92
    %125 = vmatprep.subr.mxu0 0.0
    %126 = vmatpush1.msra.mxu0 %v91
    %127 = vmatprep.subr.mxu0 0.0
    %128 = vmatpush1.msra.mxu0 %v90
    %129 = vmatprep.subr.mxu0 0.0
    %130 = vmatpush1.msra.mxu0 %v89
    %131 = vmatprep.subr.mxu0 0.0
    %132 = vmatpush1.msra.mxu0 %v88
    %133 = vmatprep.subr.mxu0 0.0
    %134 = vmatpush1.msra.mxu0 %v87
    %135 = vmatprep.subr.mxu0 0.0
    %136 = vmatpush2.msra.mxu0 0.0
    %137 = vmatprep.subr.mxu0 0.0
    %138 = vmatpush2.msra.mxu0 0.0
    %139 = vmatprep.subr.mxu0 0.0
    %140 = vmatpush2.msra.mxu0 0.0
    %141 = vmatprep.subr.mxu0 0.0
    %142 = vmatpush2.msra.mxu0 0.0
    %143 = vmatprep.subr.mxu0 0.0
    %144 = vmatpush2.msra.mxu0 0.0
    %145 = vmatprep.subr.mxu0 0.0
    %146 = vmatpush2.msra.mxu0 0.0
    %147 = vmatprep.subr.mxu0 0.0
    %148 = vmatpush2.msra.mxu0 0.0
    %149 = vmatprep.subr.mxu0 0.0
    %150 = vmatpush2.msra.mxu0 0.0
    %151 = vmatprep.subr.mxu0 0.0
    %152 = vmatpush2.msra.mxu0 0.0
    %153 = vmatprep.subr.mxu0 0.0
    %154 = vmatpush2.msra.mxu0 0.0
    %155 = vmatprep.subr.mxu0 0.0
    %156 = vmatpush2.msra.mxu0 0.0
    %157 = vmatprep.subr.mxu0 0.0
    %158 = vmatpush2.msra.mxu0 0.0
    %159 = vmatprep.subr.mxu0 0.0
    %160 = vmatpush2.msra.mxu0 0.0
    %161 = vmatprep.subr.mxu0 0.0
    %162 = vmatpush2.msra.mxu0 0.0
    %163 = vmatprep.subr.mxu0 0.0
    %164 = vmatpush2.msra.mxu0 0.0
    %165 = vmatprep.subr.mxu0 0.0
    %166 = vmatpush2.msra.mxu0 0.0
    %167 = vmatprep.mubr.f32.mxu0 0.0
    %168 = vmatmul.mubr.f32.gmra.mxu0 %v86
    %v169 = vpop.f32.mrf.mxu0
    %v170 = vadd.f32 0.0, %v169
    %v171 = vpop.f32.mrf.mxu0
    %172 = vdwg.mxu0
    %173 = vmatprep.subr.mxu0 0.0
    %174 = vmatpush1.msra.mxu0 %v85
    %175 = vmatprep.subr.mxu0 0.0
    %176 = vmatpush1.msra.mxu0 %v84
    %177 = vmatprep.subr.mxu0 0.0
    %178 = vmatpush1.msra.mxu0 %v83
    %179 = vmatprep.subr.mxu0 0.0
    %180 = vmatpush1.msra.mxu0 %v82
    %181 = vmatprep.subr.mxu0 0.0
    %182 = vmatpush1.msra.mxu0 %v81
    %183 = vmatprep.subr.mxu0 0.0
    %184 = vmatpush1.msra.mxu0 %v80
    %185 = vmatprep.subr.mxu0 0.0
    %186 = vmatpush1.msra.mxu0 %v79
    %187 = vmatprep.subr.mxu0 0.0
    %188 = vmatpush1.msra.mxu0 %v78
    %189 = vmatprep.subr.mxu0 0.0
    %190 = vmatpush1.msra.mxu0 %v77
    %191 = vmatprep.subr.mxu0 0.0
    %192 = vmatpush1.msra.mxu0 %v76
    %193 = vmatprep.subr.mxu0 0.0
    %194 = vmatpush1.msra.mxu0 %v75
    %195 = vmatprep.subr.mxu0 0.0
    %196 = vmatpush1.msra.mxu0 %v74
    %197 = vmatprep.subr.mxu0 0.0
    %198 = vmatpush1.msra.mxu0 %v73
    %199 = vmatprep.subr.mxu0 0.0
    %200 = vmatpush1.msra.mxu0 %v72
    %201 = vmatprep.subr.mxu0 0.0
    %202 = vmatpush1.msra.mxu0 %v71
    %203 = vmatprep.subr.mxu0 0.0
    %204 = vmatpush1.msra.mxu0 %v70
    %205 = vmatprep.subr.mxu0 0.0
    %206 = vmatpush2.msra.mxu0 0.0
    %207 = vmatprep.subr.mxu0 0.0
    %208 = vmatpush2.msra.mxu0 0.0
    %209 = vmatprep.subr.mxu0 0.0
    %210 = vmatpush2.msra.mxu0 0.0
    %211 = vmatprep.subr.mxu0 0.0
    %212 = vmatpush2.msra.mxu0 0.0
    %213 = vmatprep.subr.mxu0 0.0
    %214 = vmatpush2.msra.mxu0 0.0
    %215 = vmatprep.subr.mxu0 0.0
    %216 = vmatpush2.msra.mxu0 0.0
    %217 = vmatprep.subr.mxu0 0.0
    %218 = vmatpush2.msra.mxu0 0.0
    %219 = vmatprep.subr.mxu0 0.0
    %220 = vmatpush2.msra.mxu0 0.0
    %221 = vmatprep.subr.mxu0 0.0
    %222 = vmatpush2.msra.mxu0 0.0
    %223 = vmatprep.subr.mxu0 0.0
    %224 = vmatpush2.msra.mxu0 0.0
    %225 = vmatprep.subr.mxu0 0.0
    %226 = vmatpush2.msra.mxu0 0.0
    %227 = vmatprep.subr.mxu0 0.0
    %228 = vmatpush2.msra.mxu0 0.0
    %229 = vmatprep.subr.mxu0 0.0
    %230 = vmatpush2.msra.mxu0 0.0
    %231 = vmatprep.subr.mxu0 0.0
    %232 = vmatpush2.msra.mxu0 0.0
    %233 = vmatprep.subr.mxu0 0.0
    %234 = vmatpush2.msra.mxu0 0.0
    %235 = vmatprep.subr.mxu0 0.0
    %236 = vmatpush2.msra.mxu0 0.0
    %237 = vmatprep.mubr.f32.mxu0 0.0
    %238 = vmatmul.mubr.f32.gmra.mxu0 %v69
    %v239 = vpop.f32.mrf.mxu0
    %v240 = vadd.f32 %v170, %v239
    %v241 = vpop.f32.mrf.mxu0
    %242 = vdwg.mxu0
    %v243 = vld [vmem:[%s4] sm:$0x1]
    %v245 = vlaneseq
    %v246 = vshrl.u32 %v245, 7
    %v247 = vsub.s32 0, %v246
    %v248 = vrot.slane %v243, %v247
    %v250 = vadd.f32 %v240, %v248
    %v251 = vtanh.pop %v250
    %252 = vst [vmem:[%s8] sm:$0xff] %v251
    %v253 = vld [vmem:[#allocation6] sm:$0xff]
    %v254 = vld [vmem:[#allocation6 + $0x8] sm:$0xff]
    %v255 = vld [vmem:[#allocation6 + $0x10] sm:$0xff]
    %v256 = vld [vmem:[#allocation6 + $0x18] sm:$0xff]
    %v257 = vld [vmem:[#allocation6 + $0x20] sm:$0xff]
    %v258 = vld [vmem:[#allocation6 + $0x28] sm:$0xff]
    %v259 = vld [vmem:[#allocation6 + $0x30] sm:$0xff]
    %v260 = vld [vmem:[#allocation6 + $0x38] sm:$0xff]
    %v261 = vld [vmem:[#allocation6 + $0x40] sm:$0xff]
    %v262 = vld [vmem:[#allocation6 + $0x48] sm:$0xff]
    %v263 = vld [vmem:[#allocation6 + $0x50] sm:$0xff]
    %v264 = vld [vmem:[#allocation6 + $0x58] sm:$0xff]
    %v265 = vld [vmem:[#allocation6 + $0x60] sm:$0xff]
    %v266 = vld [vmem:[#allocation6 + $0x68] sm:$0xff]
    %v267 = vld [vmem:[#allocation6 + $0x70] sm:$0xff]
    %v268 = vld [vmem:[#allocation6 + $0x78] sm:$0xff]
    %v269 = vld [vmem:[%s6] sm:$0x1]
    %v271 = vlaneseq
    %v272 = vshrl.u32 %v271, 7
    %v273 = vsub.s32 0, %v272
    %v274 = vrot.slane %v269, %v273
    %276 = vmatprep.subr.mxu0 0.0
    %277 = vmatpush1.msra.mxu0 %v268
    %278 = vmatprep.subr.mxu0 0.0
    %279 = vmatpush1.msra.mxu0 %v267
    %280 = vmatprep.subr.mxu0 0.0
    %281 = vmatpush1.msra.mxu0 %v266
    %282 = vmatprep.subr.mxu0 0.0
    %283 = vmatpush1.msra.mxu0 %v265
    %284 = vmatprep.subr.mxu0 0.0
    %285 = vmatpush1.msra.mxu0 %v264
    %286 = vmatprep.subr.mxu0 0.0
    %287 = vmatpush1.msra.mxu0 %v263
    %288 = vmatprep.subr.mxu0 0.0
    %289 = vmatpush1.msra.mxu0 %v262
    %290 = vmatprep.subr.mxu0 0.0
    %291 = vmatpush1.msra.mxu0 %v261
    %292 = vmatprep.subr.mxu0 0.0
    %293 = vmatpush1.msra.mxu0 %v260
    %294 = vmatprep.subr.mxu0 0.0
    %295 = vmatpush1.msra.mxu0 %v259
    %296 = vmatprep.subr.mxu0 0.0
    %297 = vmatpush1.msra.mxu0 %v258
    %298 = vmatprep.subr.mxu0 0.0
    %299 = vmatpush1.msra.mxu0 %v257
    %300 = vmatprep.subr.mxu0 0.0
    %301 = vmatpush1.msra.mxu0 %v256
    %302 = vmatprep.subr.mxu0 0.0
    %303 = vmatpush1.msra.mxu0 %v255
    %304 = vmatprep.subr.mxu0 0.0
    %305 = vmatpush1.msra.mxu0 %v254
    %306 = vmatprep.subr.mxu0 0.0
    %307 = vmatpush1.msra.mxu0 %v253
    %308 = vmatprep.subr.mxu0 0.0
    %309 = vmatpush2.msra.mxu0 0.0
    %310 = vmatprep.subr.mxu0 0.0
    %311 = vmatpush2.msra.mxu0 0.0
    %312 = vmatprep.subr.mxu0 0.0
    %313 = vmatpush2.msra.mxu0 0.0
    %314 = vmatprep.subr.mxu0 0.0
    %315 = vmatpush2.msra.mxu0 0.0
    %316 = vmatprep.subr.mxu0 0.0
    %317 = vmatpush2.msra.mxu0 0.0
    %318 = vmatprep.subr.mxu0 0.0
    %319 = vmatpush2.msra.mxu0 0.0
    %320 = vmatprep.subr.mxu0 0.0
    %321 = vmatpush2.msra.mxu0 0.0
    %322 = vmatprep.subr.mxu0 0.0
    %323 = vmatpush2.msra.mxu0 0.0
    %324 = vmatprep.subr.mxu0 0.0
    %325 = vmatpush2.msra.mxu0 0.0
    %326 = vmatprep.subr.mxu0 0.0
    %327 = vmatpush2.msra.mxu0 0.0
    %328 = vmatprep.subr.mxu0 0.0
    %329 = vmatpush2.msra.mxu0 0.0
    %330 = vmatprep.subr.mxu0 0.0
    %331 = vmatpush2.msra.mxu0 0.0
    %332 = vmatprep.subr.mxu0 0.0
    %333 = vmatpush2.msra.mxu0 0.0
    %334 = vmatprep.subr.mxu0 0.0
    %335 = vmatpush2.msra.mxu0 0.0
    %336 = vmatprep.subr.mxu0 0.0
    %337 = vmatpush2.msra.mxu0 0.0
    %338 = vmatprep.subr.mxu0 0.0
    %339 = vmatpush2.msra.mxu0 0.0
    %340 = vmatprep.mubr.f32.mxu0 0.0
    %341 = vmatmul.mubr.f32.gmra.mxu0 %v250
    %v342 = vpop.f32.mrf.mxu0
    %v343 = vadd.f32 %v274, %v342
    %v344 = vpop.f32.mrf.mxu0
    %345 = vdwg.mxu0
    %v346 = vlaneseq
    %v347 = vshrl.u32 %v346, 7
    %vm348 = vcmp.lt.s32.totalorder %v347, 4
    %v349 = vsel %vm348, %v343, -inf
    %v350 = vrot.slane %v349, 4
    %v351 = vmax.f32 %v349, %v350
    %v352 = vrot.slane %v351, 2
    %v353 = vmax.f32 %v351, %v352
    %v354 = vrot.slane %v353, 1
    %v355 = vmax.f32 %v353, %v354
    %v356 = vsub.f32 %v349, %v355
    %v357 = vmul.f32 %v356, 1.442695
    %v358 = vpow.pop %v357
    %v359 = vrot.slane %v358, 4
    %v360 = vadd.f32 %v358, %v359
    %v361 = vrot.slane %v360, 2
    %v362 = vadd.f32 %v360, %v361
    %v363 = vrot.slane %v362, 1
    %v364 = vadd.f32 %v362, %v363
    %v365 = vrcp.pop %v364
    %v366 = vmul.f32 %v358, %v365
    %367 = vst [vmem:[%s7] sm:$0xff] %v366
    // Predicated region
    $region42: #{simple_rnn_step.1} parent=1 // pred_check
      _
    $region43: #{simple_rnn_step.1} parent=1 // pred_check_branch
      %369 = sbr.rel (0) target = $region45
    $region44: #{simple_rnn_step.1} parent=1 // pred_region
      _
    $region45: #{simple_rnn_step.1} parent=1 // pred_fallthru
      _
    // Predicated region
    $region46: #{simple_rnn_step.1} parent=1 // pred_check
      _
    $region47: #{simple_rnn_step.1} parent=1 // pred_check_branch
      %371 = sbr.rel (0) target = $region49
    $region48: #{simple_rnn_step.1} parent=1 // pred_region
      _
    $region49: #{simple_rnn_step.1} parent=1 // pred_fallthru
      _
    // Predicated region
    $region50: #{simple_rnn_step.1} parent=1 // pred_check
      _
    $region51: #{simple_rnn_step.1} parent=1 // pred_check_branch
      %373 = sbr.rel (0) target = $region53
    $region52: #{simple_rnn_step.1} parent=1 // pred_region
      _
    $region53: #{simple_rnn_step.1} parent=1 // pred_fallthru
      _
    // Predicated region
    $region54: #{simple_rnn_step.1} parent=1 // pred_check
      _
    $region55: #{simple_rnn_step.1} parent=1 // pred_check_branch
      %375 = sbr.rel (0) target = $region57
    $region56: #{simple_rnn_step.1} parent=1 // pred_region
      _
    $region57: #{simple_rnn_step.1} parent=1 // pred_fallthru
      _
    %376 = vsyncpa [#allocation3], 1
    %377 = vsyncpa [#allocation5], 1

</llo_original>
